<compile_context>
chip_gen: v6e
topology: v6e:2x2x1
jax: 0.10.0
libtpu: 0.0.40
codegen_flags: <defaults>
</compile_context>

<pallas_src>
import functools

import jax
import jax.numpy as jnp
from jax import lax
from jax.experimental import pallas as pl
from jax.experimental.pallas import tpu as pltpu


def _round_up(x, m):
    return (x + m - 1) // m * m


def _vmem_budget():
    """Generation-aware VMEM working budget / scoped limit (bytes)."""
    try:
        cap = int(pltpu.get_tpu_info().vmem_capacity_bytes)
    except Exception:
        cap = 64 * 1024 * 1024          # conservative (v7x-sized) fallback
    budget = cap * 7 // 10              # working budget for tile sizing
    limit = cap * 7 // 8                # vmem_limit_bytes cap (compiler headroom)
    return budget, limit


def _choose_batch_tile(n, per_row_bytes, fixed_bytes, budget, max_tile_n):
    """Pick (tile_n, steps, n_pad): fits VMEM, >=2 grid steps when the batch
    allows (keeps v7x's second TensorCore busy), bounded row-padding waste."""
    n8 = _round_up(max(int(n), 1), 8)
    avail = budget - fixed_bytes
    if avail > 8 * per_row_bytes:
        cap = min(int(max_tile_n), (avail // per_row_bytes) // 8 * 8)
    else:
        cap = 8
    cap = max(8, cap)
    steps = -(-n8 // cap)                       # ceil
    if n8 >= 16:
        steps = max(steps, 2)                   # megacore: at least 2 grid steps
    tile_n = _round_up(-(-n8 // steps), 8)
    n_pad = tile_n * steps
    return tile_n, steps, n_pad


def _choose_gene_tile(n_out_pad, cap):
    """Largest multiple-of-128 divisor of n_out_pad not exceeding cap."""
    cap_blocks = max(1, int(cap) // 128)
    q = n_out_pad // 128
    for d in range(min(q, cap_blocks), 0, -1):
        if q % d == 0:
            return d * 128
    return 128


# --------------------------------------------------------------------------
# Kernels
# --------------------------------------------------------------------------
def _mono_kernel(n_out_pad, n_out_valid, z_ref, w_ref, lib_ref,
                 scale_ref, rate_ref, drop_ref):
    z = z_ref[...]                                        # (tile_n, d_in_pad)
    # One fused MXU matmul for both linear heads (K is tiny).
    fused = jnp.dot(z, w_ref[...], preferred_element_type=jnp.float32)
    # Store the dropout head first: ends that half's live range and lets the
    # vst slot overlap with the softmax EUP/XLU work.
    drop_ref[...] = fused[:, n_out_pad:].astype(drop_ref.dtype)

    raw = fused[:, :n_out_pad]
    if n_out_valid < n_out_pad:
        col = lax.broadcasted_iota(jnp.int32, raw.shape, 1)
        raw = jnp.where(col < n_out_valid, raw, jnp.float32(-1e30))

    m = jnp.max(raw, axis=-1, keepdims=True)
    e = jnp.exp(raw - m)
    inv = 1.0 / jnp.sum(e, axis=-1, keepdims=True)        # exact parity w/ torch
    scale_ref[...] = (e * inv).astype(scale_ref.dtype)
    rate_ref[...] = (e * (jnp.exp(lib_ref[...]) * inv)).astype(rate_ref.dtype)


def _gene_tiled_kernel(n_out_pad, n_out_valid, tile_g,
                       z_ref, w_ref, lib_ref,
                       scale_ref, rate_ref, drop_ref, m_sc, l_sc):
    g = pl.program_id(1)
    z = z_ref[...]                                        # (tile_n, d_in_pad)
    tile_n = z.shape[0]

    @pl.when(g == 0)
    def _():
        # Online-softmax statistics over all gene tiles.  The full (tiny-K)
        # weight is resident in VMEM so this recompute is cheap and keeps the
        # (tile_n, n_out_pad) intermediate out of VMEM.
        def body(c, carry):
            m, l = carry
            start = pl.multiple_of(c * tile_g, tile_g)
            raw_c = jnp.dot(z, w_ref[:, pl.ds(start, tile_g)],
                            preferred_element_type=jnp.float32)
            col = lax.broadcasted_iota(jnp.int32, raw_c.shape, 1) + start
            raw_c = jnp.where(col < n_out_valid, raw_c, jnp.float32(-1e30))
            m_new = jnp.maximum(m, jnp.max(raw_c, axis=-1, keepdims=True))
            l = l * jnp.exp(m - m_new) + jnp.sum(jnp.exp(raw_c - m_new),
                                                 axis=-1, keepdims=True)
            return m_new, l

        m0 = jnp.full((tile_n, 1), -1e30, jnp.float32)
        l0 = jnp.zeros((tile_n, 1), jnp.float32)
        m, l = lax.fori_loop(0, n_out_pad // tile_g, body, (m0, l0))
        m_sc[...] = m
        l_sc[...] = l

    start = pl.multiple_of(g * tile_g, tile_g)
    # Dropout head for this gene tile (store immediately).
    drop = jnp.dot(z, w_ref[:, pl.ds(pl.multiple_of(n_out_pad + start, 128),
                                     tile_g)],
                   preferred_element_type=jnp.float32)
    drop_ref[...] = drop.astype(drop_ref.dtype)

    # Scale / rate heads using the per-batch-tile softmax stats.
    raw = jnp.dot(z, w_ref[:, pl.ds(start, tile_g)],
                  preferred_element_type=jnp.float32)
    col = lax.broadcasted_iota(jnp.int32, raw.shape, 1) + start
    raw = jnp.where(col < n_out_valid, raw, jnp.float32(-1e30))
    e = jnp.exp(raw - m_sc[...])
    inv = 1.0 / l_sc[...]
    scale_ref[...] = (e * inv).astype(scale_ref.dtype)
    rate_ref[...] = (e * (jnp.exp(lib_ref[...]) * inv)).astype(rate_ref.dtype)


# --------------------------------------------------------------------------
# pallas_call builders
# --------------------------------------------------------------------------
def _build_mono_call(*, n_pad, d_in_pad, n_out_pad, n_out, tile_n, out_dtype,
                     vmem_limit):
    two_out = 2 * n_out_pad
    grid_spec = pltpu.PrefetchScalarGridSpec(
        num_scalar_prefetch=0,
        grid=(n_pad // tile_n,),
        in_specs=[
            pl.BlockSpec((tile_n, d_in_pad), lambda i: (i, 0)),
            pl.BlockSpec((d_in_pad, two_out), lambda i: (0, 0)),   # constant
            pl.BlockSpec((tile_n, 1), lambda i: (i, 0)),
        ],
        out_specs=[pl.BlockSpec((tile_n, n_out_pad), lambda i: (i, 0))] * 3,
    )
    out_bytes = jnp.dtype(out_dtype).itemsize
    cost = pl.CostEstimate(
        flops=2 * n_pad * d_in_pad * two_out,
        transcendentals=n_pad * (n_out_pad + 1),
        bytes_accessed=4 * (n_pad * d_in_pad + d_in_pad * two_out + n_pad)
        + 3 * n_pad * n_out_pad * out_bytes)
    return pl.pallas_call(
        functools.partial(_mono_kernel, n_out_pad, n_out),
        out_shape=tuple(jax.ShapeDtypeStruct((n_pad, n_out_pad), out_dtype)
                        for _ in range(3)),
        grid_spec=grid_spec,
        compiler_params=pltpu.CompilerParams(
            dimension_semantics=("parallel",),
            vmem_limit_bytes=vmem_limit),
        cost_estimate=cost,
    )


def _build_tiled_call(*, n_pad, d_in_pad, n_out_pad, n_out, tile_n, tile_g,
                      out_dtype, vmem_limit):
    two_out = 2 * n_out_pad
    grid_spec = pltpu.PrefetchScalarGridSpec(
        num_scalar_prefetch=0,
        grid=(n_pad // tile_n, n_out_pad // tile_g),
        in_specs=[
            pl.BlockSpec((tile_n, d_in_pad), lambda i, g: (i, 0)),
            pl.BlockSpec((d_in_pad, two_out), lambda i, g: (0, 0)),  # constant
            pl.BlockSpec((tile_n, 1), lambda i, g: (i, 0)),
        ],
        out_specs=[pl.BlockSpec((tile_n, tile_g), lambda i, g: (i, g))] * 3,
        scratch_shapes=[pltpu.VMEM((tile_n, 1), jnp.float32),
                        pltpu.VMEM((tile_n, 1), jnp.float32)],
    )
    out_bytes = jnp.dtype(out_dtype).itemsize
    cost = pl.CostEstimate(
        flops=2 * n_pad * d_in_pad * (two_out + n_out_pad),
        transcendentals=n_pad * (2 * n_out_pad + 1),
        bytes_accessed=4 * (n_pad * d_in_pad + d_in_pad * two_out + n_pad)
        + 3 * n_pad * n_out_pad * out_bytes)
    return pl.pallas_call(
        functools.partial(_gene_tiled_kernel, n_out_pad, n_out, tile_g),
        out_shape=tuple(jax.ShapeDtypeStruct((n_pad, n_out_pad), out_dtype)
                        for _ in range(3)),
        grid_spec=grid_spec,
        compiler_params=pltpu.CompilerParams(
            dimension_semantics=("parallel", "arbitrary"),
            vmem_limit_bytes=vmem_limit),
        cost_estimate=cost,
    )


# --------------------------------------------------------------------------
# Host-side wrapper (fully jitted forward)
# --------------------------------------------------------------------------
def prepare_linear_decoder_params(params):
    """One-time weight preparation (off the hot path).

    params: {'w_scale': (n_out, d_in), 'w_dropout': (n_out, d_in),
             'n_cat_list': [...]}  (PyTorch nn.Linear weight layout).
    """
    w_scale = jnp.asarray(params["w_scale"], jnp.float32)
    w_dropout = jnp.asarray(params["w_dropout"], jnp.float32)
    n_out, d_in = w_scale.shape
    d_in_pad = _round_up(d_in, 8)         # sublane-aligned contraction dim
    n_out_pad = _round_up(n_out, 128)     # lane-dense outputs (unmasked vst)

    def _pad_t(w):                        # (n_out, d_in) -> (d_in_pad, n_out_pad)
        return jnp.pad(w.T, ((0, d_in_pad - d_in), (0, n_out_pad - n_out)))

    w_fused = jnp.concatenate([_pad_t(w_scale), _pad_t(w_dropout)], axis=1)
    return {
        "w_fused": w_fused,               # (d_in_pad, 2*n_out_pad), f32
        "n_cat_list": tuple(int(c) for c in params["n_cat_list"]),
        "d_in": int(d_in), "d_in_pad": int(d_in_pad),
        "n_out": int(n_out), "n_out_pad": int(n_out_pad),
    }


@functools.partial(
    jax.jit,
    static_argnames=("n_cat_list", "d_in", "n_out", "out_dtype",
                     "max_tile_n", "gene_tile_cap"))
def _forward(z, library, cat_list, w_fused, *, n_cat_list, d_in, n_out,
             out_dtype, max_tile_n, gene_tile_cap):
    one_hots = [jax.nn.one_hot(c, nc, dtype=z.dtype)
                for nc, c in zip(n_cat_list, cat_list) if nc > 1]
    z_cat = jnp.concatenate([z, *one_hots], axis=-1) if one_hots else z
    n, d = z_cat.shape
    assert d == d_in, "covariate layout does not match prepared weights"
    d_in_pad, two_out = w_fused.shape
    n_out_pad = two_out // 2

    budget, vmem_cap = _vmem_budget()
    w_bytes = 2 * d_in_pad * two_out * 4      # constant weight block, 2 buffers

    use_tiled = n_out_pad > gene_tile_cap
    if use_tiled:
        tile_g = _choose_gene_tile(n_out_pad, gene_tile_cap)
        # z + lib + 3 outputs double-buffered + per-gene-tile temporaries.
        per_row = 8 * d_in_pad + 44 * tile_g + 24
    else:
        tile_g = n_out_pad
        # Also count the fused (tile_n, 2*n_out_pad) intermediate and the
        # raw/e/drop temporaries — not just the pipelined buffers.
        per_row = 8 * d_in_pad + 44 * n_out_pad + 8
    tile_n, _steps, n_pad = _choose_batch_tile(n, per_row, w_bytes, budget,
                                               max_tile_n)
    vmem_need = w_bytes + tile_n * per_row
    vmem_limit = int(min(max(vmem_need * 5 // 4, 32 * 1024 * 1024), vmem_cap))

    z_pad = jnp.pad(z_cat.astype(jnp.float32),
                    ((0, n_pad - n), (0, d_in_pad - d)))
    lib_pad = jnp.pad(jnp.asarray(library, jnp.float32).reshape(n, 1),
                      ((0, n_pad - n), (0, 0)))

    if use_tiled:
        fn = _build_tiled_call(n_pad=n_pad, d_in_pad=d_in_pad,
                               n_out_pad=n_out_pad, n_out=n_out,
                               tile_n=tile_n, tile_g=tile_g,
                               out_dtype=out_dtype, vmem_limit=vmem_limit)
    else:
        fn = _build_mono_call(n_pad=n_pad, d_in_pad=d_in_pad,
                              n_out_pad=n_out_pad, n_out=n_out,
                              tile_n=tile_n, out_dtype=out_dtype,
                              vmem_limit=vmem_limit)
    px_scale, px_rate, px_dropout = fn(z_pad, w_fused, lib_pad)
    return (px_scale[:n, :n_out], px_rate[:n, :n_out], px_dropout[:n, :n_out])


def linear_decoder_scvi(dispersion, z, library, cat_list, prepared, *,
                        out_dtype=jnp.float32, max_tile_n=1024,
                        gene_tile_cap=2048):
    """Mirrors LinearDecoderSCVI.forward.  `prepared` from
    prepare_linear_decoder_params.  out_dtype=jnp.bfloat16 halves the
    HBM store stream if downstream tolerates it (compute stays f32)."""
    del dispersion                                  # px_r is None in this module
    px_scale, px_rate, px_dropout = _forward(
        z, library, tuple(cat_list), prepared["w_fused"],
        n_cat_list=tuple(prepared["n_cat_list"]),
        d_in=prepared["d_in"], n_out=prepared["n_out"],
        out_dtype=out_dtype, max_tile_n=int(max_tile_n),
        gene_tile_cap=int(gene_tile_cap))
    return px_scale, None, px_rate, px_dropout


# --------------------------------------------------------------------------
# Reference + self-test
# --------------------------------------------------------------------------
def _reference(z, library, cat_list, params):
    one_hots = [jax.nn.one_hot(c, n, dtype=z.dtype)
                for n, c in zip(params["n_cat_list"], cat_list) if n > 1]
    z_cat = jnp.concatenate([z, *one_hots], axis=-1) if one_hots else z
    raw = jnp.dot(z_cat, params["w_scale"].T, precision=lax.Precision.HIGHEST)
    px_scale = jax.nn.softmax(raw, axis=-1)
    px_dropout = jnp.dot(z_cat, params["w_dropout"].T,
                         precision=lax.Precision.HIGHEST)
    px_rate = jnp.exp(library) * px_scale
    return px_scale, None, px_rate, px_dropout


if __name__ == "__main__":
    key = jax.random.PRNGKey(0)
    k_z, k_lib, k_cat, k_w1, k_w2 = jax.random.split(key, 5)

    n_batch = 10                 # not a multiple of 8 -> exercises row padding
    n_input = 32
    n_output = 200               # not a multiple of 128 -> exercises lane pad+mask
    n_cat_list = [4]
    d_in = n_input + sum(c for c in n_cat_list if c > 1)

    z = jax.random.normal(k_z, (n_batch, n_input), dtype=jnp.float32)
    library = jax.random.normal(k_lib, (n_batch, 1), dtype=jnp.float32)
    cat0 = jax.random.randint(k_cat, (n_batch,), 0, n_cat_list[0])

    bound = 1.0 / (d_in ** 0.5)
    params = {
        "n_cat_list": n_cat_list,
        "w_scale": jax.random.uniform(
            k_w1, (n_output, d_in), minval=-bound, maxval=bound,
            dtype=jnp.float32),
        "w_dropout": jax.random.uniform(
            k_w2, (n_output, d_in), minval=-bound, maxval=bound,
            dtype=jnp.float32),
    }

    prepared = prepare_linear_decoder_params(params)     # one-time, off hot path
    ref_scale, _, ref_rate, ref_dropout = _reference(z, library, [cat0], params)

    # 1) Monolithic fused-head path (small/moderate gene counts).
    px_scale, px_r, px_rate, px_dropout = linear_decoder_scvi(
        "gene", z, library, [cat0], prepared)
    jax.block_until_ready((px_scale, px_rate, px_dropout))

    assert px_r is None
    assert px_scale.shape == (n_batch, n_output)
    assert jnp.allclose(px_scale.sum(-1), 1.0, atol=1e-3)
    assert jnp.allclose(px_scale, ref_scale, atol=1e-5, rtol=2e-3)
    assert jnp.allclose(px_rate, ref_rate, atol=1e-4, rtol=2e-3)
    assert jnp.allclose(px_dropout, ref_dropout, atol=1e-4, rtol=2e-3)

    # 2) Gene-tiled online-softmax path (forced with a tiny cap so it runs at
    #    test scale; this is the path used at real scVI gene counts).
    t_scale, t_r, t_rate, t_dropout = linear_decoder_scvi(
        "gene", z, library, [cat0], prepared, gene_tile_cap=128)
    jax.block_until_ready((t_scale, t_rate, t_dropout))

    assert t_r is None
    assert jnp.allclose(t_scale.sum(-1), 1.0, atol=1e-3)
    assert jnp.allclose(t_scale, ref_scale, atol=1e-5, rtol=2e-3)
    assert jnp.allclose(t_rate, ref_rate, atol=1e-4, rtol=2e-3)
    assert jnp.allclose(t_dropout, ref_dropout, atol=1e-4, rtol=2e-3)

    print("KERNEL_OK")
</pallas_src>

<mosaic_0001>
module attributes {stable_mosaic.version = 11 : i64} {
  func.func @_mono_kernel(%arg0: i32, %arg1: memref<8x40xf32, #tpu.memory_space<vmem>>, %arg2: memref<40x512xf32, #tpu.memory_space<vmem>>, %arg3: memref<8x1xf32, #tpu.memory_space<vmem>>, %arg4: memref<8x256xf32, #tpu.memory_space<vmem>>, %arg5: memref<8x256xf32, #tpu.memory_space<vmem>>, %arg6: memref<8x256xf32, #tpu.memory_space<vmem>>) attributes {dimension_semantics = [#tpu.dimension_semantics<parallel>], iteration_bounds = array<i64: 2>, scalar_prefetch = 0 : i64, scratch_operands = 0 : i64, tpu.core_type = #tpu.core_type<tc>, window_params = [{transform_indices = @transform_0, window_bounds = array<i64: 8, 40>}, {pipeline_mode = #tpu.pipeline_mode<synchronous>, transform_indices = @transform_1, window_bounds = array<i64: 40, 512>}, {transform_indices = @transform_2, window_bounds = array<i64: 8, 1>}, {transform_indices = @transform_3, window_bounds = array<i64: 8, 256>}, {transform_indices = @transform_4, window_bounds = array<i64: 8, 256>}, {transform_indices = @transform_5, window_bounds = array<i64: 8, 256>}]} {
    %c0 = arith.constant 0 : index
    %c0_0 = arith.constant 0 : index
    %0 = vector.load %arg1[%c0, %c0_0] : memref<8x40xf32, #tpu.memory_space<vmem>>, vector<8x40xf32>
    %c0_1 = arith.constant 0 : index
    %c0_2 = arith.constant 0 : index
    %1 = vector.load %arg2[%c0_1, %c0_2] : memref<40x512xf32, #tpu.memory_space<vmem>>, vector<40x512xf32>
    %cst = arith.constant dense<0.000000e+00> : vector<8x512xf32>
    %2 = tpu.matmul %0, %1, %cst {dimension_numbers = #tpu.dot_dimension_numbers<[1], [0], [0], [1], [0, 0, 1, 1], [], []>} : vector<8x40xf32>, vector<40x512xf32>, vector<8x512xf32> -> vector<8x512xf32>
    %3 = vector.extract_strided_slice %2 {offsets = [0, 256], sizes = [8, 256], strides = [1, 1]} : vector<8x512xf32> to vector<8x256xf32>
    %c0_3 = arith.constant 0 : index
    %c0_4 = arith.constant 0 : index
    %4 = vector.load %arg6[%c0_3, %c0_4] : memref<8x256xf32, #tpu.memory_space<vmem>>, vector<8x256xf32>
    tpu.vector_store %arg6[%c0_3, %c0_4], %3 {strides = array<i32>} : memref<8x256xf32, #tpu.memory_space<vmem>>, vector<8x256xf32>,
    %5 = vector.extract_strided_slice %2 {offsets = [0, 0], sizes = [8, 256], strides = [1, 1]} : vector<8x512xf32> to vector<8x256xf32>
    %6 = tpu.iota {dimensions = array<i32: 1>} : vector<8x256xi32>
    %c200_i32 = arith.constant 200 : i32
    %7 = vector.broadcast %c200_i32 : i32 to vector<8x256xi32>
    %8 = arith.cmpi slt, %6, %7 : vector<8x256xi32>
    %cst_5 = arith.constant -1.000000e+30 : f32
    %9 = vector.broadcast %cst_5 : f32 to vector<8x256xf32>
    %10 = arith.select %8, %5, %9 : vector<8x256xi1>, vector<8x256xf32>
    %cst_6 = arith.constant dense<0xFF800000> : vector<8xf32>
    %11 = vector.multi_reduction <maximumf>, %10, %cst_6 [1] : vector<8x256xf32> to vector<8xf32>
    %12 = vector.shape_cast %11 : vector<8xf32> to vector<8x1xf32>
    %13 = vector.broadcast %12 : vector<8x1xf32> to vector<8x256xf32>
    %14 = arith.subf %10, %13 : vector<8x256xf32>
    %15 = math.exp %14 : vector<8x256xf32>
    %cst_7 = arith.constant dense<0.000000e+00> : vector<8xf32>
    %16 = vector.multi_reduction <add>, %15, %cst_7 [1] : vector<8x256xf32> to vector<8xf32>
    %17 = vector.shape_cast %16 : vector<8xf32> to vector<8x1xf32>
    %cst_8 = arith.constant 1.000000e+00 : f32
    %18 = vector.broadcast %cst_8 : f32 to vector<8x1xf32>
    %19 = arith.divf %18, %17 : vector<8x1xf32>
    %20 = vector.broadcast %19 : vector<8x1xf32> to vector<8x256xf32>
    %21 = arith.mulf %15, %20 : vector<8x256xf32>
    %c0_9 = arith.constant 0 : index
    %c0_10 = arith.constant 0 : index
    %22 = vector.load %arg4[%c0_9, %c0_10] : memref<8x256xf32, #tpu.memory_space<vmem>>, vector<8x256xf32>
    tpu.vector_store %arg4[%c0_9, %c0_10], %21 {strides = array<i32>} : memref<8x256xf32, #tpu.memory_space<vmem>>, vector<8x256xf32>,
    %c0_11 = arith.constant 0 : index
    %c0_12 = arith.constant 0 : index
    %23 = vector.load %arg3[%c0_11, %c0_12] : memref<8x1xf32, #tpu.memory_space<vmem>>, vector<8x1xf32>
    %24 = math.exp %23 : vector<8x1xf32>
    %25 = arith.mulf %24, %19 : vector<8x1xf32>
    %26 = vector.broadcast %25 : vector<8x1xf32> to vector<8x256xf32>
    %27 = arith.mulf %15, %26 : vector<8x256xf32>
    %c0_13 = arith.constant 0 : index
    %c0_14 = arith.constant 0 : index
    %28 = vector.load %arg5[%c0_13, %c0_14] : memref<8x256xf32, #tpu.memory_space<vmem>>, vector<8x256xf32>
    tpu.vector_store %arg5[%c0_13, %c0_14], %27 {strides = array<i32>} : memref<8x256xf32, #tpu.memory_space<vmem>>, vector<8x256xf32>,
    return
  }
  func.func @transform_0(%arg0: i32) -> (i32, i32) {
    %c0_i32 = arith.constant 0 : i32
    %c0_i32_0 = arith.constant 0 : i32
    return %arg0, %c0_i32 : i32, i32
  }
  func.func @transform_1(%arg0: i32) -> (i32, i32) {
    %c0_i32 = arith.constant 0 : i32
    %c0_i32_0 = arith.constant 0 : i32
    %c0_i32_1 = arith.constant 0 : i32
    return %c0_i32, %c0_i32_0 : i32, i32
  }
  func.func @transform_2(%arg0: i32) -> (i32, i32) {
    %c0_i32 = arith.constant 0 : i32
    %c0_i32_0 = arith.constant 0 : i32
    return %arg0, %c0_i32 : i32, i32
  }
  func.func @transform_3(%arg0: i32) -> (i32, i32) {
    %c0_i32 = arith.constant 0 : i32
    %c0_i32_0 = arith.constant 0 : i32
    return %arg0, %c0_i32 : i32, i32
  }
  func.func @transform_4(%arg0: i32) -> (i32, i32) {
    %c0_i32 = arith.constant 0 : i32
    %c0_i32_0 = arith.constant 0 : i32
    return %arg0, %c0_i32 : i32, i32
  }
  func.func @transform_5(%arg0: i32) -> (i32, i32) {
    %c0_i32 = arith.constant 0 : i32
    %c0_i32_0 = arith.constant 0 : i32
    return %arg0, %c0_i32 : i32, i32
  }
}

</mosaic_0001>

<llo_original>
// kernel: _forward.1
$region0: #{_forward.1}
  #allocation0 [shape = 'u32[]', space=smem, size = 0x4, offset = 0x4, fixed_abs, tag = 'smem constant byte address 0x4 - core index']
  #allocation1 [shape = 'u32[144,128]{1,0:T(1,128)}', space=vmem, size = 0x12000, scoped, tag = 'internal scratch']
  %s0 = inlined_call_operand.vmem [shape: f32[16,40], index: 0, kind: input, shape index: {}]
  %s1 = inlined_call_operand.hbm [shape: f32[40,512], index: 1, kind: input, shape index: {}]
  %s2 = inlined_call_operand.vmem [shape: f32[16,1], index: 2, kind: input, shape index: {}]
  %s3 = inlined_call_operand.hbm [shape: f32[16,256], index: 3, kind: output, shape index: {0}]
  %s4 = inlined_call_operand.hbm [shape: f32[16,256], index: 4, kind: output, shape index: {1}]
  %s5 = inlined_call_operand.hbm [shape: f32[16,256], index: 5, kind: output, shape index: {2}]
  %6 = xla_tuple %s3, %s4, %s5
  %s7 = sld [smem:[#allocation0]]
  $region65: #{_forward.1} parent=0
    _
  %s9 = ssub.s32 1, %s7
  %s10 = scalar_select 0, %s9, %s7
  $region1: #{_forward.1} parent=0
    #allocation2 [shape = 'u8[81920]{0}', space=vmem, size = 0x14000, scoped, tag = 'input window, operand 1, single buffered']
    #allocation3 [shape = 's32[2]{0}', space=sflag, size = 0x8, scoped, tag = 'scoped memory for _forward.1']
    #allocation4 [shape = 's32[2]{0}', space=sflag, size = 0x8, scoped, tag = 'scoped memory for _forward.1']
    #allocation5 [shape = 'u8[16384]{0}', space=vmem, size = 0x4000, scoped, tag = 'output window, operand 0']
    #allocation6 [shape = 'u8[16384]{0}', space=vmem, size = 0x4000, scoped, tag = 'output window, operand 1']
    #allocation7 [shape = 's32[2]{0}', space=sflag, size = 0x8, scoped, tag = 'scoped memory for _forward.1']
    #allocation8 [shape = 'u8[16384]{0}', space=vmem, size = 0x4000, scoped, tag = 'output window, operand 2']
    %11 = vsyncpa [#allocation3], 0
    %12 = vsyncpa [#allocation4], 0
    %s13 = scalar_lea.sflag [#allocation4], 1
    %14 = vsyncpa %s13, 0
    %15 = vsyncpa [#allocation7], 0
    %s16 = scalar_lea.sflag [#allocation7], 1
    %17 = vsyncpa %s16, 0
    loop: start=0, step=1, limit=4
    $region2: #{_forward.1} parent=1 // loop_pre_header
      _
    $region3: #{_forward.1} parent=1 // loop_header
      %s19 = sphi 0, %s23
      %p20 = scmp.ge.s32.totalorder %s19, 4
      %s29 = sphi 0, %s31
      %s32 = sphi 0, %s29
      %s33 = sphi 0, %s32
      %s49 = sphi 0, %s33
      %s53 = sphi 0, %s53
      %s55 = sphi 0, %s53
      %s56 = sphi 0, %s55
      %s70 = sphi 0, %s56
      %s76 = sphi 0, %s78
      %s79 = sphi 0, %s76
      %s80 = sphi 0, %s79
      %s96 = sphi 0, %s80
      %s102 = sphi 0, %s104
      %s105 = sphi 0, %s102
      %s106 = sphi 0, %s105
      %s122 = sphi 0, %s106
      %s128 = sphi 0, %s130
      %s131 = sphi 0, %s128
      %s132 = sphi 0, %s131
      %s148 = sphi 0, %s132
      %s154 = sphi 0, %s156
      %s157 = sphi 0, %s154
      %s158 = sphi 0, %s157
      %s174 = sphi 0, %s158
    $region4: #{_forward.1} parent=1 // loop_header_branch
      %22 = sbr.rel (%p20) target = $region8
    $region5: #{_forward.1} parent=1 // loop_body
      %s24 = ssub.s32 %s19, 1
      %s25 = ssub.s32 %s19, 2
      %s26 = sadd.s32 %s19, 1
      %s27 = ssub.s32 %s19, %s26
      %p28 = scmp.eq.s32.totalorder %s27, 0
      %s30 = sadd.s32 %s29, 1
      %s31 = scalar_select %p28, %s29, %s30
      %p34 = pneg %p28
      %p35 = scmp.eq.s32.totalorder %s19, 1
      %p36 = por %p34, %p35
      %p37 = scmp.ne.s32.totalorder %s29, %s32
      %p38 = scmp.eq.s32.totalorder %s19, 0
      %p39 = por %p37, %p38
      %p40 = scmp.ne.s32.totalorder %s29, %s32
      %p41 = scmp.eq.s32.totalorder %s24, 1
      %p42 = por %p40, %p41
      %p43 = scmp.ne.s32.totalorder %s32, %s33
      %p44 = scmp.eq.s32.totalorder %s24, 0
      %p45 = por %p43, %p44
      %p46 = scmp.ne.s32.totalorder %s32, %s33
      %p47 = scmp.eq.s32.totalorder %s25, 1
      %p48 = por %p46, %p47
      %p50 = scmp.ne.s32.totalorder %s33, %s49
      %p51 = scmp.eq.s32.totalorder %s25, 0
      %p52 = por %p50, %p51
      %s54 = sadd.s32 %s53, 1
      %p57 = scmp.eq.s32.totalorder %s19, 1
      %p58 = scmp.ne.s32.totalorder %s53, %s55
      %p59 = scmp.eq.s32.totalorder %s19, 0
      %p60 = por %p58, %p59
      %p61 = scmp.ne.s32.totalorder %s53, %s55
      %p62 = scmp.eq.s32.totalorder %s24, 1
      %p63 = por %p61, %p62
      %p64 = scmp.ne.s32.totalorder %s55, %s56
      %p65 = scmp.eq.s32.totalorder %s24, 0
      %p66 = por %p64, %p65
      %p67 = scmp.ne.s32.totalorder %s55, %s56
      %p68 = scmp.eq.s32.totalorder %s25, 1
      %p69 = por %p67, %p68
      %p71 = scmp.ne.s32.totalorder %s56, %s70
      %p72 = scmp.eq.s32.totalorder %s25, 0
      %p73 = por %p71, %p72
      %s74 = ssub.s32 %s19, %s26
      %p75 = scmp.eq.s32.totalorder %s74, 0
      %s77 = sadd.s32 %s76, 1
      %s78 = scalar_select %p75, %s76, %s77
      %p81 = pneg %p75
      %p82 = scmp.eq.s32.totalorder %s19, 1
      %p83 = por %p81, %p82
      %p84 = scmp.ne.s32.totalorder %s76, %s79
      %p85 = scmp.eq.s32.totalorder %s19, 0
      %p86 = por %p84, %p85
      %p87 = scmp.ne.s32.totalorder %s76, %s79
      %p88 = scmp.eq.s32.totalorder %s24, 1
      %p89 = por %p87, %p88
      %p90 = scmp.ne.s32.totalorder %s79, %s80
      %p91 = scmp.eq.s32.totalorder %s24, 0
      %p92 = por %p90, %p91
      %p93 = scmp.ne.s32.totalorder %s79, %s80
      %p94 = scmp.eq.s32.totalorder %s25, 1
      %p95 = por %p93, %p94
      %p97 = scmp.ne.s32.totalorder %s80, %s96
      %p98 = scmp.eq.s32.totalorder %s25, 0
      %p99 = por %p97, %p98
      %s100 = ssub.s32 %s19, %s26
      %p101 = scmp.eq.s32.totalorder %s100, 0
      %s103 = sadd.s32 %s102, 1
      %s104 = scalar_select %p101, %s102, %s103
      %p107 = pneg %p101
      %p108 = scmp.eq.s32.totalorder %s19, 1
      %p109 = por %p107, %p108
      %p110 = scmp.ne.s32.totalorder %s102, %s105
      %p111 = scmp.eq.s32.totalorder %s19, 0
      %p112 = por %p110, %p111
      %p113 = scmp.ne.s32.totalorder %s102, %s105
      %p114 = scmp.eq.s32.totalorder %s24, 1
      %p115 = por %p113, %p114
      %p116 = scmp.ne.s32.totalorder %s105, %s106
      %p117 = scmp.eq.s32.totalorder %s24, 0
      %p118 = por %p116, %p117
      %p119 = scmp.ne.s32.totalorder %s105, %s106
      %p120 = scmp.eq.s32.totalorder %s25, 1
      %p121 = por %p119, %p120
      %p123 = scmp.ne.s32.totalorder %s106, %s122
      %p124 = scmp.eq.s32.totalorder %s25, 0
      %p125 = por %p123, %p124
      %s126 = ssub.s32 %s19, %s26
      %p127 = scmp.eq.s32.totalorder %s126, 0
      %s129 = sadd.s32 %s128, 1
      %s130 = scalar_select %p127, %s128, %s129
      %p133 = pneg %p127
      %p134 = scmp.eq.s32.totalorder %s19, 1
      %p135 = por %p133, %p134
      %p136 = scmp.ne.s32.totalorder %s128, %s131
      %p137 = scmp.eq.s32.totalorder %s19, 0
      %p138 = por %p136, %p137
      %p139 = scmp.ne.s32.totalorder %s128, %s131
      %p140 = scmp.eq.s32.totalorder %s24, 1
      %p141 = por %p139, %p140
      %p142 = scmp.ne.s32.totalorder %s131, %s132
      %p143 = scmp.eq.s32.totalorder %s24, 0
      %p144 = por %p142, %p143
      %p145 = scmp.ne.s32.totalorder %s131, %s132
      %p146 = scmp.eq.s32.totalorder %s25, 1
      %p147 = por %p145, %p146
      %p149 = scmp.ne.s32.totalorder %s132, %s148
      %p150 = scmp.eq.s32.totalorder %s25, 0
      %p151 = por %p149, %p150
      %s152 = ssub.s32 %s19, %s26
      %p153 = scmp.eq.s32.totalorder %s152, 0
      %s155 = sadd.s32 %s154, 1
      %s156 = scalar_select %p153, %s154, %s155
      %p159 = pneg %p153
      %p160 = scmp.eq.s32.totalorder %s19, 1
      %p161 = por %p159, %p160
      %p162 = scmp.ne.s32.totalorder %s154, %s157
      %p163 = scmp.eq.s32.totalorder %s19, 0
      %p164 = por %p162, %p163
      %p165 = scmp.ne.s32.totalorder %s154, %s157
      %p166 = scmp.eq.s32.totalorder %s24, 1
      %p167 = por %p165, %p166
      %p168 = scmp.ne.s32.totalorder %s157, %s158
      %p169 = scmp.eq.s32.totalorder %s24, 0
      %p170 = por %p168, %p169
      %p171 = scmp.ne.s32.totalorder %s157, %s158
      %p172 = scmp.eq.s32.totalorder %s25, 1
      %p173 = por %p171, %p172
      %p175 = scmp.ne.s32.totalorder %s158, %s174
      %p176 = scmp.eq.s32.totalorder %s25, 0
      %p177 = por %p175, %p176
      %p178 = scmp.le.s32.totalorder 1, %s19
      %p179 = scmp.lt.s32.totalorder %s19, 3
      %p180 = pnand %p178, %p179
      %p181 = pneg %p180
      // Predicated region
      $region9: #{_forward.1} parent=5 // pred_check
        _
      $region10: #{_forward.1} parent=5 // pred_check_branch
        %183 = sbr.rel (%p180) target = $region12
      $region11: #{_forward.1} parent=5 // pred_region
        %s184 = ssub.s32 %s19, 1
        // Predicated region
        $region13: #{_forward.1} parent=11 // pred_check
          %p185 = pneg %p66
        $region14: #{_forward.1} parent=11 // pred_check_branch
          %187 = sbr.rel (%p185) target = $region16
        $region15: #{_forward.1} parent=11 // pred_region
          %s189 = ssub.s32 2560, 2560
          %190 = vsyncadd [#allocation3], %s189
          %s191 = sshll.u32 [#allocation2], 4
          %s192 = int_to_ptr.vmem [resolvable:$true] %s191
          %197 = dma.hbm_to_vmem [thread:$0]  %s1, 2560, %s192, [#allocation3], 512, 512, 32
        $region16: #{_forward.1} parent=11 // pred_fallthru
          _
      $region12: #{_forward.1} parent=5 // pred_fallthru
        _
      %p198 = scmp.lt.s32.totalorder %s19, 2
      // Predicated region
      $region17: #{_forward.1} parent=5 // pred_check
        %p199 = pneg %p198
      $region18: #{_forward.1} parent=5 // pred_check_branch
        %201 = sbr.rel (%p199) target = $region20
      $region19: #{_forward.1} parent=5 // pred_region
        // Predicated region
        $region21: #{_forward.1} parent=19 // pred_check
          %p202 = pneg %p39
        $region22: #{_forward.1} parent=19 // pred_check_branch
          %204 = sbr.rel (%p202) target = $region24
        $region23: #{_forward.1} parent=19 // pred_region
          %p205 = scmp.lt.s32.totalorder %s19, 1
          %s206 = scalar_select %p205, %s19, 1
          %s207 = smul.addr %s206, 8
          %s208 = scalar_lea.vmem %s0, %s207
        $region24: #{_forward.1} parent=19 // pred_fallthru
          _
        // Predicated region
        $region25: #{_forward.1} parent=19 // pred_check
          %p209 = pneg %p86
        $region26: #{_forward.1} parent=19 // pred_check_branch
          %211 = sbr.rel (%p209) target = $region28
        $region27: #{_forward.1} parent=19 // pred_region
          %p212 = scmp.lt.s32.totalorder %s19, 1
          %s213 = scalar_select %p212, %s19, 1
          %s214 = smul.addr %s213, 8
          %s215 = scalar_lea.vmem %s2, %s214
        $region28: #{_forward.1} parent=19 // pred_fallthru
          _
      $region20: #{_forward.1} parent=5 // pred_fallthru
        _
      %p216 = scmp.le.s32.totalorder 1, %s19
      %p217 = scmp.lt.s32.totalorder %s19, 3
      %p218 = pnand %p216, %p217
      %p219 = pneg %p218
      // Predicated region
      $region29: #{_forward.1} parent=5 // pred_check
        _
      $region30: #{_forward.1} parent=5 // pred_check_branch
        %221 = sbr.rel (%p218) target = $region32
      $region31: #{_forward.1} parent=5 // pred_region
        %s222 = ssub.s32 %s19, 1
        // Predicated region
        $region33: #{_forward.1} parent=31 // pred_check
          %p223 = pneg %p66
        $region34: #{_forward.1} parent=31 // pred_check_branch
          %225 = sbr.rel (%p223) target = $region36
        $region35: #{_forward.1} parent=31 // pred_region
          %226 = dma.done [#allocation3], 2560
        $region36: #{_forward.1} parent=31 // pred_fallthru
          _
        %p227 = scmp.lt.s32.totalorder %s24, 1
        %s228 = scalar_select %p227, %s24, 1
        %s229 = smul.addr %s228, 8
        %s230 = scalar_lea.vmem %s0, %s229
        %p231 = pneg %p45
        %p232 = pneg %p42
        %p233 = pneg %p66
        %p234 = pneg %p63
        %p235 = scmp.lt.s32.totalorder %s24, 1
        %s236 = scalar_select %p235, %s24, 1
        %s237 = smul.addr %s236, 8
        %s238 = scalar_lea.vmem %s2, %s237
        %p239 = pneg %p92
        %p240 = pneg %p89
        %p241 = pneg %p118
        %p242 = pneg %p115
        %s243 = sand.u32 %s105, 1
        %s244 = scalar_lea.sflag [#allocation4], %s243
        %s245 = sand.u32 %s105, 1
        %s246 = smul.addr %s245, 16
        %s247 = scalar_lea.vmem [#allocation5], %s246
        %p248 = pneg %p144
        %p249 = pneg %p141
        %s250 = sand.u32 %s24, 1
        %s251 = scalar_lea.sflag [#allocation7], %s250
        %s252 = sand.u32 %s131, 1
        %s253 = smul.addr %s252, 16
        %s254 = scalar_lea.vmem [#allocation6], %s253
        %p255 = pneg %p170
        %p256 = pneg %p167
        %s257 = sand.u32 %s24, 1
        %s258 = scalar_lea.sflag [#allocation7], %s257
        %s259 = sand.u32 %s157, 1
        %s260 = smul.addr %s259, 16
        %s261 = scalar_lea.vmem [#allocation8], %s260
        %p262 = scmp.lt.s32.totalorder %s24, 1
        %s263 = scalar_select %p262, %s24, 1
        %s264 = smul.addr %s263, 8
        %s265 = scalar_lea.vmem %s0, %s264
        %p266 = scmp.lt.s32.totalorder %s24, 1
        %s267 = scalar_select %p266, %s24, 1
        %s268 = smul.addr %s267, 8
        %s269 = scalar_lea.vmem %s2, %s268
        %v270 = vld [vmem:[%s265] sm:$0xff]
        %v271 = vld [vmem:[#allocation2] sm:$0xff]
        %v272 = vld [vmem:[#allocation2 + $0x8] sm:$0xff]
        %v273 = vld [vmem:[#allocation2 + $0x10] sm:$0xff]
        %v274 = vld [vmem:[#allocation2 + $0x18] sm:$0xff]
        %v275 = vld [vmem:[#allocation2 + $0x20] sm:$0xff]
        %v276 = vld [vmem:[#allocation2 + $0x28] sm:$0xff]
        %v277 = vld [vmem:[#allocation2 + $0x30] sm:$0xff]
        %v278 = vld [vmem:[#allocation2 + $0x38] sm:$0xff]
        %v279 = vld [vmem:[#allocation2 + $0x40] sm:$0xff]
        %v280 = vld [vmem:[#allocation2 + $0x48] sm:$0xff]
        %v281 = vld [vmem:[#allocation2 + $0x50] sm:$0xff]
        %v282 = vld [vmem:[#allocation2 + $0x58] sm:$0xff]
        %v283 = vld [vmem:[#allocation2 + $0x60] sm:$0xff]
        %v284 = vld [vmem:[#allocation2 + $0x68] sm:$0xff]
        %v285 = vld [vmem:[#allocation2 + $0x70] sm:$0xff]
        %v286 = vld [vmem:[#allocation2 + $0x78] sm:$0xff]
        %v287 = vld [vmem:[#allocation2 + $0x80] sm:$0xff]
        %v288 = vld [vmem:[#allocation2 + $0x88] sm:$0xff]
        %v289 = vld [vmem:[#allocation2 + $0x90] sm:$0xff]
        %v290 = vld [vmem:[#allocation2 + $0x98] sm:$0xff]
        %vm291 = vcmask 326656
        %v293 = vsel %vm291, %v270, 0
        %295 = vmatprep.subr.mxu0 0.0
        %296 = vmatpush1.msra.mxu0 0.0
        %297 = vmatprep.subr.mxu0 0.0
        %298 = vmatpush1.msra.mxu0 0.0
        %299 = vmatprep.subr.mxu0 0.0
        %300 = vmatpush1.msra.mxu0 0.0
        %301 = vmatprep.subr.mxu0 0.0
        %302 = vmatpush1.msra.mxu0 0.0
        %303 = vmatprep.subr.mxu0 0.0
        %304 = vmatpush1.msra.mxu0 0.0
        %305 = vmatprep.subr.mxu0 0.0
        %306 = vmatpush1.msra.mxu0 0.0
        %307 = vmatprep.subr.mxu0 0.0
        %308 = vmatpush1.msra.mxu0 0.0
        %309 = vmatprep.subr.mxu0 0.0
        %310 = vmatpush1.msra.mxu0 0.0
        %311 = vmatprep.subr.mxu0 0.0
        %312 = vmatpush1.msra.mxu0 0.0
        %313 = vmatprep.subr.mxu0 0.0
        %314 = vmatpush1.msra.mxu0 0.0
        %315 = vmatprep.subr.mxu0 0.0
        %316 = vmatpush1.msra.mxu0 0.0
        %317 = vmatprep.subr.mxu0 %v288
        %318 = vmatpush1.msra.mxu0 %v287
        %319 = vmatprep.subr.mxu0 %v284
        %320 = vmatpush1.msra.mxu0 %v283
        %321 = vmatprep.subr.mxu0 %v280
        %322 = vmatpush1.msra.mxu0 %v279
        %323 = vmatprep.subr.mxu0 %v276
        %324 = vmatpush1.msra.mxu0 %v275
        %325 = vmatprep.subr.mxu0 %v272
        %326 = vmatpush1.msra.mxu0 %v271
        %327 = vmatprep.subr.mxu0 0.0
        %328 = vmatpush2.msra.mxu0 0.0
        %329 = vmatprep.subr.mxu0 0.0
        %330 = vmatpush2.msra.mxu0 0.0
        %331 = vmatprep.subr.mxu0 0.0
        %332 = vmatpush2.msra.mxu0 0.0
        %333 = vmatprep.subr.mxu0 0.0
        %334 = vmatpush2.msra.mxu0 0.0
        %335 = vmatprep.subr.mxu0 0.0
        %336 = vmatpush2.msra.mxu0 0.0
        %337 = vmatprep.subr.mxu0 0.0
        %338 = vmatpush2.msra.mxu0 0.0
        %339 = vmatprep.subr.mxu0 0.0
        %340 = vmatpush2.msra.mxu0 0.0
        %341 = vmatprep.subr.mxu0 0.0
        %342 = vmatpush2.msra.mxu0 0.0
        %343 = vmatprep.subr.mxu0 0.0
        %344 = vmatpush2.msra.mxu0 0.0
        %345 = vmatprep.subr.mxu0 0.0
        %346 = vmatpush2.msra.mxu0 0.0
        %347 = vmatprep.subr.mxu0 0.0
        %348 = vmatpush2.msra.mxu0 0.0
        %349 = vmatprep.subr.mxu0 0.0
        %350 = vmatpush2.msra.mxu0 0.0
        %351 = vmatprep.subr.mxu0 0.0
        %352 = vmatpush2.msra.mxu0 0.0
        %353 = vmatprep.subr.mxu0 0.0
        %354 = vmatpush2.msra.mxu0 0.0
        %355 = vmatprep.subr.mxu0 0.0
        %356 = vmatpush2.msra.mxu0 0.0
        %357 = vmatprep.subr.mxu0 0.0
        %358 = vmatpush2.msra.mxu0 0.0
        %359 = vmatprep.mubr.f32.mxu0 0.0
        %360 = vmatmul.mubr.f32.gmra.mxu0 %v293
        %v361 = vpop.f32.mrf.mxu0
        %v362 = vadd.f32 0.0, %v361
        %v363 = vpop.f32.mrf.mxu0
        %v364 = vadd.f32 0.0, %v363
        %365 = vdwg.mxu0
        %366 = vmatprep.subr.mxu0 0.0
        %367 = vmatpush1.msra.mxu0 0.0
        %368 = vmatprep.subr.mxu0 0.0
        %369 = vmatpush1.msra.mxu0 0.0
        %370 = vmatprep.subr.mxu0 0.0
        %371 = vmatpush1.msra.mxu0 0.0
        %372 = vmatprep.subr.mxu0 0.0
        %373 = vmatpush1.msra.mxu0 0.0
        %374 = vmatprep.subr.mxu0 0.0
        %375 = vmatpush1.msra.mxu0 0.0
        %376 = vmatprep.subr.mxu0 0.0
        %377 = vmatpush1.msra.mxu0 0.0
        %378 = vmatprep.subr.mxu0 0.0
        %379 = vmatpush1.msra.mxu0 0.0
        %380 = vmatprep.subr.mxu0 0.0
        %381 = vmatpush1.msra.mxu0 0.0
        %382 = vmatprep.subr.mxu0 0.0
        %383 = vmatpush1.msra.mxu0 0.0
        %384 = vmatprep.subr.mxu0 0.0
        %385 = vmatpush1.msra.mxu0 0.0
        %386 = vmatprep.subr.mxu0 0.0
        %387 = vmatpush1.msra.mxu0 0.0
        %388 = vmatprep.subr.mxu0 %v290
        %389 = vmatpush1.msra.mxu0 %v289
        %390 = vmatprep.subr.mxu0 %v286
        %391 = vmatpush1.msra.mxu0 %v285
        %392 = vmatprep.subr.mxu0 %v282
        %393 = vmatpush1.msra.mxu0 %v281
        %394 = vmatprep.subr.mxu0 %v278
        %395 = vmatpush1.msra.mxu0 %v277
        %396 = vmatprep.subr.mxu0 %v274
        %397 = vmatpush1.msra.mxu0 %v273
        %398 = vmatprep.subr.mxu0 0.0
        %399 = vmatpush2.msra.mxu0 0.0
        %400 = vmatprep.subr.mxu0 0.0
        %401 = vmatpush2.msra.mxu0 0.0
        %402 = vmatprep.subr.mxu0 0.0
        %403 = vmatpush2.msra.mxu0 0.0
        %404 = vmatprep.subr.mxu0 0.0
        %405 = vmatpush2.msra.mxu0 0.0
        %406 = vmatprep.subr.mxu0 0.0
        %407 = vmatpush2.msra.mxu0 0.0
        %408 = vmatprep.subr.mxu0 0.0
        %409 = vmatpush2.msra.mxu0 0.0
        %410 = vmatprep.subr.mxu0 0.0
        %411 = vmatpush2.msra.mxu0 0.0
        %412 = vmatprep.subr.mxu0 0.0
        %413 = vmatpush2.msra.mxu0 0.0
        %414 = vmatprep.subr.mxu0 0.0
        %415 = vmatpush2.msra.mxu0 0.0
        %416 = vmatprep.subr.mxu0 0.0
        %417 = vmatpush2.msra.mxu0 0.0
        %418 = vmatprep.subr.mxu0 0.0
        %419 = vmatpush2.msra.mxu0 0.0
        %420 = vmatprep.subr.mxu0 0.0
        %421 = vmatpush2.msra.mxu0 0.0
        %422 = vmatprep.subr.mxu0 0.0
        %423 = vmatpush2.msra.mxu0 0.0
        %424 = vmatprep.subr.mxu0 0.0
        %425 = vmatpush2.msra.mxu0 0.0
        %426 = vmatprep.subr.mxu0 0.0
        %427 = vmatpush2.msra.mxu0 0.0
        %428 = vmatprep.subr.mxu0 0.0
        %429 = vmatpush2.msra.mxu0 0.0
        %430 = vmatprep.mubr.f32.mxu0 0.0
        %431 = vmatmul.mubr.f32.gmra.mxu0 %v293
        %v432 = vpop.f32.mrf.mxu0
        %v433 = vadd.f32 0.0, %v432
        %v434 = vpop.f32.mrf.mxu0
        %v435 = vadd.f32 0.0, %v434
        %436 = vdwg.mxu0
        %437 = vst [vmem:[%s261] sm:$0xff] %v433
        %438 = vst [vmem:[%s261 + $0x8] sm:$0xff] %v435
        %v439 = vlaneseq
        %v440 = vand.u32 %v439, 127
        %v441 = vadd.s32 %v440, 128
        %vm442 = vcmp.lt.s32.totalorder %v440, 200
        %vm443 = vcmp.lt.s32.totalorder %v441, 200
        %v444 = vsel %vm442, %v362, -1e+30
        %v445 = vsel %vm443, %v364, -1e+30
        %v446 = vmax.f32 %v444, %v445
        %447 = vmax.xlane.f32.xlu0 %v446
        %v448 = vpop.xlane.xlu0 %447
        %v449 = vsub.f32 %v444, %v448
        %v450 = vsub.f32 %v445, %v448
        %v451 = vmul.f32 %v449, 1.442695
        %v452 = vpow.pop %v451
        %v453 = vmul.f32 %v450, 1.442695
        %v454 = vpow.pop %v453
        %v455 = vadd.f32 %v452, %v454
        %456 = vadd.xlane.f32.xlu0 %v455
        %v457 = vpop.xlane.xlu0 %456
        %v458 = vrcp.pop %v457
        %v459 = vmul.f32 1.0, %v458
        %v460 = vmul.f32 %v452, %v459
        %v461 = vmul.f32 %v454, %v459
        %462 = vst [vmem:[%s247] sm:$0xff] %v460
        %463 = vst [vmem:[%s247 + $0x8] sm:$0xff] %v461
        %v464 = vld [vmem:[%s269] sm:$0xff]
        %v465 = vmul.f32 %v464, 1.442695
        %v466 = vpow.pop %v465
        %v467 = vmul.f32 %v466, %v459
        %469 = vset.pattern.permute.xlu0 0
        %470 = vperm.xlu0 %469, %v467
        %v471 = vpop.permute.xlu0 %470
        %v473 = vmul.f32 %v452, %v471
        %v474 = vmul.f32 %v454, %v471
        %475 = vst [vmem:[%s254] sm:$0xff] %v473
        %476 = vst [vmem:[%s254 + $0x8] sm:$0xff] %v474
        %s477 = sand.u32 %s105, 1
        %s478 = scalar_lea.sflag [#allocation4], %s477
        %s479 = sand.u32 %s105, 1
        %s480 = smul.addr %s479, 16
        %s481 = scalar_lea.vmem [#allocation5], %s480
        %s482 = sand.u32 %s24, 1
        %s483 = scalar_lea.sflag [#allocation7], %s482
        %s484 = sand.u32 %s131, 1
        %s485 = smul.addr %s484, 16
        %s486 = scalar_lea.vmem [#allocation6], %s485
        %s487 = sand.u32 %s24, 1
        %s488 = scalar_lea.sflag [#allocation7], %s487
        %s489 = sand.u32 %s157, 1
        %s490 = smul.addr %s489, 16
        %s491 = scalar_lea.vmem [#allocation8], %s490
        // Predicated region
        $region37: #{_forward.1} parent=31 // pred_check
          %p492 = pneg %p115
        $region38: #{_forward.1} parent=31 // pred_check_branch
          %494 = sbr.rel (%p492) target = $region40
        $region39: #{_forward.1} parent=31 // pred_region
          %s496 = ssub.s32 256, 256
          %497 = vsyncadd %s478, %s496
          %s498 = smul.addr %s24, 2
          %s499 = smul.addr %s498, 128
          %s500 = scalar_lea.hbm %s3, %s499
          %s502 = sshll.u32 %s481, 4
          %s503 = int_to_ptr.vmem [resolvable:$true] %s502
          %505 = dma.vmem_to_hbm [thread:$0]  %s503, 256, %s500, %s478
        $region40: #{_forward.1} parent=31 // pred_fallthru
          _
        // Predicated region
        $region41: #{_forward.1} parent=31 // pred_check
          %p506 = pneg %p141
        $region42: #{_forward.1} parent=31 // pred_check_branch
          %508 = sbr.rel (%p506) target = $region44
        $region43: #{_forward.1} parent=31 // pred_region
          %s510 = ssub.s32 256, 256
          %511 = vsyncadd %s483, %s510
          %s512 = smul.addr %s24, 2
          %s513 = smul.addr %s512, 128
          %s514 = scalar_lea.hbm %s4, %s513
          %s516 = sshll.u32 %s486, 4
          %s517 = int_to_ptr.vmem [resolvable:$true] %s516
          %519 = dma.vmem_to_hbm [thread:$0]  %s517, 256, %s514, %s483
        $region44: #{_forward.1} parent=31 // pred_fallthru
          _
        // Predicated region
        $region45: #{_forward.1} parent=31 // pred_check
          %p520 = pneg %p167
        $region46: #{_forward.1} parent=31 // pred_check_branch
          %522 = sbr.rel (%p520) target = $region48
        $region47: #{_forward.1} parent=31 // pred_region
          %s524 = ssub.s32 256, 256
          %525 = vsyncadd %s488, %s524
          %s526 = smul.addr %s24, 2
          %s527 = smul.addr %s526, 128
          %s528 = scalar_lea.hbm %s5, %s527
          %s530 = sshll.u32 %s491, 4
          %s531 = int_to_ptr.vmem [resolvable:$true] %s530
          %533 = dma.vmem_to_hbm [thread:$0]  %s531, 256, %s528, %s488
        $region48: #{_forward.1} parent=31 // pred_fallthru
          _
      $region32: #{_forward.1} parent=5 // pred_fallthru
        _
      %p534 = scmp.le.s32.totalorder 2, %s19
      // Predicated region
      $region49: #{_forward.1} parent=5 // pred_check
        %p535 = pneg %p534
      $region50: #{_forward.1} parent=5 // pred_check_branch
        %537 = sbr.rel (%p535) target = $region52
      $region51: #{_forward.1} parent=5 // pred_region
        %s538 = ssub.s32 %s19, 2
        // Predicated region
        $region53: #{_forward.1} parent=51 // pred_check
          %p539 = pneg %p121
        $region54: #{_forward.1} parent=51 // pred_check_branch
          %541 = sbr.rel (%p539) target = $region56
        $region55: #{_forward.1} parent=51 // pred_region
          %s542 = sand.u32 %s106, 1
          %s543 = scalar_lea.sflag [#allocation4], %s542
          %s544 = sand.u32 %s106, 1
          %s545 = smul.addr %s544, 16
          %s546 = scalar_lea.vmem [#allocation5], %s545
          %547 = dma.done %s543, 256
        $region56: #{_forward.1} parent=51 // pred_fallthru
          _
        // Predicated region
        $region57: #{_forward.1} parent=51 // pred_check
          %p548 = pneg %p147
        $region58: #{_forward.1} parent=51 // pred_check_branch
          %550 = sbr.rel (%p548) target = $region60
        $region59: #{_forward.1} parent=51 // pred_region
          %s551 = sand.u32 %s25, 1
          %s552 = scalar_lea.sflag [#allocation7], %s551
          %s553 = sand.u32 %s132, 1
          %s554 = smul.addr %s553, 16
          %s555 = scalar_lea.vmem [#allocation6], %s554
          %556 = dma.done %s552, 256
        $region60: #{_forward.1} parent=51 // pred_fallthru
          _
        // Predicated region
        $region61: #{_forward.1} parent=51 // pred_check
          %p557 = pneg %p173
        $region62: #{_forward.1} parent=51 // pred_check_branch
          %559 = sbr.rel (%p557) target = $region64
        $region63: #{_forward.1} parent=51 // pred_region
          %s560 = sand.u32 %s25, 1
          %s561 = scalar_lea.sflag [#allocation7], %s560
          %s562 = sand.u32 %s158, 1
          %s563 = smul.addr %s562, 16
          %s564 = scalar_lea.vmem [#allocation8], %s563
          %565 = dma.done %s561, 256
        $region64: #{_forward.1} parent=51 // pred_fallthru
          _
      $region52: #{_forward.1} parent=5 // pred_fallthru
        _
    $region6: #{_forward.1} parent=1 // loop_footer
      %s23 = sadd.s32 1, %s19
    $region7: #{_forward.1} parent=1 // loop_footer_branch
      %18 = sbr.rel target = $region3
    $region8: #{_forward.1} parent=1 // loop_exit
      _
    %566 = vsyncpa [#allocation3], 1
    %s567 = scalar_lea.sflag [#allocation3], 1
    %568 = vsyncpa %s567, 1
    %569 = vsyncpa [#allocation4], 1
    %s570 = scalar_lea.sflag [#allocation4], 1
    %571 = vsyncpa %s570, 1
    %572 = vsyncpa [#allocation7], 1
    %s573 = scalar_lea.sflag [#allocation7], 1
    %574 = vsyncpa %s573, 1

</llo_original>
